<compile_context>
chip_gen: v6e
topology: v6e:2x2x1
jax: 0.10.0
libtpu: 0.0.40
codegen_flags: <defaults>
</compile_context>

<pallas_src>
import jax
import jax.numpy as jnp
from jax.experimental import pallas as pl
from jax.experimental.pallas import tpu as pltpu


def _fused_pool_classifier_kernel(x_ref, w_ref, b_ref, o_ref):
    """One (batch-tile, channel-tile) grid step of fused global-avg-pool + Linear.

    x_ref : (TN, TC, HW)  NCHW activations, spatial flattened onto the lane axis
    w_ref : (TC, Kpad)    classifier weight slice, pre-scaled by 1/(H*W)
    b_ref : (1,  Kpad)    bias (class dim zero-padded to a lane-dense 128 multiple)
    o_ref : (TN, Kpad)    f32 logits block, revisited (VMEM-resident) across channels
    """
    j = pl.program_id(1)

    # First channel tile: seed the resident output block with the bias, so no
    # separate accumulator scratch and no finalize step are needed.
    @pl.when(j == 0)
    def _init():
        o_ref[...] = jnp.broadcast_to(b_ref[...], o_ref.shape)

    # Global average pool: reduce the spatial (lane) axis with f32 accumulation.
    # The 1/(H*W) scale is folded into the weight on the host.
    pooled = jnp.sum(x_ref[...].astype(jnp.float32), axis=-1)          # (TN, TC)

    # Channel contraction on the MXU, accumulated straight into the f32 output.
    o_ref[...] += jnp.dot(pooled, w_ref[...], preferred_element_type=jnp.float32)

    # TODO(synk): Dropout(p=0.2) is identity in eval/inference mode; not applied.


def _round_up(x, m):
    return ((x + m - 1) // m) * m


def _sublane_min(dtype):
    """Minimum sublane multiple for a packed dtype: f32->8, bf16->16, int8/fp8->32."""
    return max(8, 32 // jnp.dtype(dtype).itemsize)


def _vmem_capacity_bytes():
    try:
        return int(pltpu.get_tpu_info().vmem_capacity_bytes)
    except Exception:
        return 64 * 1024 * 1024  # conservative fallback (v7x-sized)


def _choose_batch_tile(n, target=256):
    """Batch tile (leading dim of the x block; sublane dim of the output block)."""
    if n <= 8 or n % 8 != 0:
        return n  # full-dim escape hatch
    t = min(n, target)
    t -= t % 8
    tn = n
    while t >= 8:
        if n % t == 0:
            tn = t
            break
        t -= 8
    # Prefer >=2 batch tiles so the parallel axis can shard over v7x's two
    # TensorCores (harmless on single-TC chips: grid steps stay large).
    if tn == n and n >= 16 and (n // 2) % 8 == 0:
        tn = n // 2
    return tn


def _choose_channel_tile(c, hw, x_itemsize, tn, smin, x_buf_budget):
    """Channel tile (sublane dim of the streamed x block); sized to a byte target."""
    if c <= smin or c % smin != 0:
        return c  # full-dim escape hatch
    per_channel = max(1, tn * hw * x_itemsize)
    max_tc = max(smin, min(c, x_buf_budget // per_channel))
    max_tc -= max_tc % smin
    max_tc = max(smin, max_tc)
    t = max_tc
    while t >= smin:
        if c % t == 0:
            return t
        t -= smin
    return c


def intermediate_classifier(x_nchw, weight, bias, *, block_batch=None, block_channels=None):
    """Inference-mode IntermediateClassifier.forward.

    x_nchw: (N, C, H, W); weight: (K, C) as in nn.Linear; bias: (K,).
    Returns (N, K) f32 logits.  Dropout(p=0.2) is eval-mode identity.
    """
    n, c, h, w = x_nchw.shape
    k = weight.shape[0]
    hw = h * w
    k_pad = _round_up(k, 128)
    x_itemsize = jnp.dtype(x_nchw.dtype).itemsize
    smin = _sublane_min(x_nchw.dtype)

    vmem_cap = _vmem_capacity_bytes()
    x_buf_budget = max(4 << 20, vmem_cap // 4)  # per x buffer (double-buffered)

    tn = block_batch if block_batch is not None else _choose_batch_tile(n)
    tc = (block_channels if block_channels is not None
          else _choose_channel_tile(c, hw, x_itemsize, tn, smin, x_buf_budget))

    # If a full-extent fallback still overshoots the per-buffer budget, shrink the
    # batch tile while keeping block-shape validity (multiple of 8 dividing N).
    if block_batch is None:
        while (tn * tc * hw * x_itemsize > x_buf_budget
               and tn % 16 == 0 and n % (tn // 2) == 0):
            tn //= 2

    # Block-shape validity: (8, 128) rule on the last two dims (or full-dim escape).
    assert n % tn == 0 and (tn == n or tn % 8 == 0), (n, tn)
    assert c % tc == 0 and (tc == c or tc % smin == 0), (c, tc, smin)

    # Free view: NCHW -> (N, C, HW); spatial lands on the lane axis, no transpose.
    x3d = x_nchw.reshape(n, c, hw)

    # Pre-scale the classifier weight by 1/(H*W) (folds the average-pool divide),
    # transpose to (C, K), and pad the class dim to a lane-dense 128 multiple.
    w_scaled = (weight.astype(jnp.float32) / float(hw)).T              # (C, K)
    w_pad = jnp.pad(w_scaled, ((0, 0), (0, k_pad - k)))                # (C, Kpad)
    b_pad = jnp.pad(bias.astype(jnp.float32).reshape(1, k),
                    ((0, 0), (0, k_pad - k)))                          # (1, Kpad)

    grid = (n // tn, c // tc)

    # VMEM need: double-buffered x stream + weight slices + bias + resident output.
    vmem_need = (2 * tn * tc * hw * x_itemsize
                 + 2 * tc * k_pad * 4
                 + 2 * k_pad * 4
                 + 2 * tn * k_pad * 4)
    vmem_limit = int(min(vmem_cap, max(2 * vmem_need, 32 * 1024 * 1024)))

    out = pl.pallas_call(
        _fused_pool_classifier_kernel,
        out_shape=jax.ShapeDtypeStruct((n, k_pad), jnp.float32),
        grid_spec=pltpu.PrefetchScalarGridSpec(
            num_scalar_prefetch=0,
            grid=grid,
            in_specs=[
                pl.BlockSpec((tn, tc, hw), lambda i, j: (i, j, 0)),    # streamed x
                pl.BlockSpec((tc, k_pad), lambda i, j: (j, 0)),        # weight slice
                pl.BlockSpec((1, k_pad), lambda i, j: (0, 0)),         # resident bias
            ],
            out_specs=pl.BlockSpec((tn, k_pad), lambda i, j: (i, 0)),  # resident logits
        ),
        compiler_params=pltpu.CompilerParams(
            dimension_semantics=("parallel", "arbitrary"),
            vmem_limit_bytes=vmem_limit,
        ),
        cost_estimate=pl.CostEstimate(
            flops=int(n * c * hw + 2 * n * c * k_pad),
            transcendentals=0,
            bytes_accessed=int(n * c * hw * x_itemsize
                               + c * k_pad * 4 + k_pad * 4 + n * k_pad * 4),
        ),
    )(x3d, w_pad, b_pad)

    return out[:, :k]


if __name__ == "__main__":
    # Module config: global_pooling_size=16 (== spatial), num_channels=4, num_classes=10
    N, C, H, W = 2, 4, 16, 16
    NUM_CLASSES = 10

    key = jax.random.PRNGKey(0)
    kx, kw, kb, kx2, kw2, kb2 = jax.random.split(key, 6)

    x = jax.random.normal(kx, (N, C, H, W), dtype=jnp.float32)
    # Deterministic synthetic Linear params (PyTorch-style uniform bound 1/sqrt(C)).
    bound = 1.0 / float(C) ** 0.5
    weight = jax.random.uniform(kw, (NUM_CLASSES, C), jnp.float32, -bound, bound)
    bias = jax.random.uniform(kb, (NUM_CLASSES,), jnp.float32, -bound, bound)

    # Auto-tiled call at the module's toy shapes.
    out = intermediate_classifier(x, weight, bias)
    jax.block_until_ready(out)
    ref = x.mean(axis=(2, 3)) @ weight.T + bias
    assert out.shape == (N, NUM_CLASSES)
    assert jnp.allclose(out, ref, atol=1e-5, rtol=1e-5)

    # Larger batch / more channels in bf16 with explicit small tiles: exercises
    # the (parallel batch x arbitrary channel) grid, the bias-seeded resident
    # output accumulation, and the bf16 streaming path (16-sublane channel tile).
    N2, C2 = 16, 64
    x2 = jax.random.normal(kx2, (N2, C2, H, W), dtype=jnp.bfloat16)
    bound2 = 1.0 / float(C2) ** 0.5
    weight2 = jax.random.uniform(kw2, (NUM_CLASSES, C2), jnp.float32, -bound2, bound2)
    bias2 = jax.random.uniform(kb2, (NUM_CLASSES,), jnp.float32, -bound2, bound2)

    out2 = intermediate_classifier(x2, weight2, bias2, block_batch=8, block_channels=16)
    jax.block_until_ready(out2)
    ref2 = x2.astype(jnp.float32).mean(axis=(2, 3)) @ weight2.T + bias2
    assert out2.shape == (N2, NUM_CLASSES)
    assert jnp.allclose(out2, ref2, atol=1e-3, rtol=1e-3)

    print("KERNEL_OK")
</pallas_src>

<mosaic_0001>
module attributes {stable_mosaic.version = 11 : i64} {
  func.func @_fused_pool_classifier_kernel(%arg0: i32, %arg1: i32, %arg2: memref<2x4x256xf32, #tpu.memory_space<vmem>>, %arg3: memref<4x128xf32, #tpu.memory_space<vmem>>, %arg4: memref<1x128xf32, #tpu.memory_space<vmem>>, %arg5: memref<2x128xf32, #tpu.memory_space<vmem>>) attributes {dimension_semantics = [#tpu.dimension_semantics<parallel>, #tpu.dimension_semantics<arbitrary>], iteration_bounds = array<i64: 1, 1>, scalar_prefetch = 0 : i64, scratch_operands = 0 : i64, tpu.core_type = #tpu.core_type<tc>, window_params = [{transform_indices = @transform_0, window_bounds = array<i64: 2, 4, 256>}, {transform_indices = @transform_1, window_bounds = array<i64: 4, 128>}, {pipeline_mode = #tpu.pipeline_mode<synchronous>, transform_indices = @transform_2, window_bounds = array<i64: 1, 128>}, {transform_indices = @transform_3, window_bounds = array<i64: 2, 128>}]} {
    %c0_i32 = arith.constant 0 : i32
    %0 = arith.cmpi eq, %arg1, %c0_i32 : i32
    %1 = arith.extui %0 : i1 to i32
    %c0_i32_0 = arith.constant 0 : i32
    %2 = arith.cmpi ne, %1, %c0_i32_0 : i32
    scf.if %2 {
      %c0_10 = arith.constant 0 : index
      %c0_11 = arith.constant 0 : index
      %10 = vector.load %arg4[%c0_10, %c0_11] : memref<1x128xf32, #tpu.memory_space<vmem>>, vector<1x128xf32>
      %11 = vector.shape_cast %10 : vector<1x128xf32> to vector<1x128xf32>
      %12 = vector.broadcast %11 : vector<1x128xf32> to vector<2x128xf32>
      %c0_12 = arith.constant 0 : index
      %c0_13 = arith.constant 0 : index
      %13 = vector.load %arg5[%c0_12, %c0_13] : memref<2x128xf32, #tpu.memory_space<vmem>>, vector<2x128xf32>
      tpu.vector_store %arg5[%c0_12, %c0_13], %12 {strides = array<i32>} : memref<2x128xf32, #tpu.memory_space<vmem>>, vector<2x128xf32>,
    } else {
    }
    %c0 = arith.constant 0 : index
    %c0_1 = arith.constant 0 : index
    %c0_2 = arith.constant 0 : index
    %3 = vector.load %arg2[%c0, %c0_1, %c0_2] : memref<2x4x256xf32, #tpu.memory_space<vmem>>, vector<2x4x256xf32>
    %cst = arith.constant dense<0.000000e+00> : vector<2x4xf32>
    %4 = vector.multi_reduction <add>, %3, %cst [2] : vector<2x4x256xf32> to vector<2x4xf32>
    %c0_3 = arith.constant 0 : index
    %c0_4 = arith.constant 0 : index
    %5 = vector.load %arg5[%c0_3, %c0_4] : memref<2x128xf32, #tpu.memory_space<vmem>>, vector<2x128xf32>
    %c0_5 = arith.constant 0 : index
    %c0_6 = arith.constant 0 : index
    %6 = vector.load %arg3[%c0_5, %c0_6] : memref<4x128xf32, #tpu.memory_space<vmem>>, vector<4x128xf32>
    %cst_7 = arith.constant dense<0.000000e+00> : vector<2x128xf32>
    %7 = tpu.matmul %4, %6, %cst_7 {dimension_numbers = #tpu.dot_dimension_numbers<[1], [0], [0], [1], [0, 0, 1, 1], [], []>} : vector<2x4xf32>, vector<4x128xf32>, vector<2x128xf32> -> vector<2x128xf32>
    %8 = arith.addf %5, %7 : vector<2x128xf32>
    %c0_8 = arith.constant 0 : index
    %c0_9 = arith.constant 0 : index
    %9 = vector.load %arg5[%c0_8, %c0_9] : memref<2x128xf32, #tpu.memory_space<vmem>>, vector<2x128xf32>
    tpu.vector_store %arg5[%c0_8, %c0_9], %8 {strides = array<i32>} : memref<2x128xf32, #tpu.memory_space<vmem>>, vector<2x128xf32>,
    return
  }
  func.func @transform_0(%arg0: i32, %arg1: i32) -> (i32, i32, i32) {
    %c0_i32 = arith.constant 0 : i32
    %c0_i32_0 = arith.constant 0 : i32
    return %arg0, %arg1, %c0_i32 : i32, i32, i32
  }
  func.func @transform_1(%arg0: i32, %arg1: i32) -> (i32, i32) {
    %c0_i32 = arith.constant 0 : i32
    %c0_i32_0 = arith.constant 0 : i32
    return %arg1, %c0_i32 : i32, i32
  }
  func.func @transform_2(%arg0: i32, %arg1: i32) -> (i32, i32) {
    %c0_i32 = arith.constant 0 : i32
    %c0_i32_0 = arith.constant 0 : i32
    %c0_i32_1 = arith.constant 0 : i32
    return %c0_i32, %c0_i32_0 : i32, i32
  }
  func.func @transform_3(%arg0: i32, %arg1: i32) -> (i32, i32) {
    %c0_i32 = arith.constant 0 : i32
    %c0_i32_0 = arith.constant 0 : i32
    return %arg0, %c0_i32 : i32, i32
  }
}

</mosaic_0001>

<llo_original>
// kernel: tpu_custom_call.1
$region0: #{tpu_custom_call.1}
  #allocation0 [shape = 'u32[]', space=smem, size = 0x4, offset = 0x4, fixed_abs, tag = 'smem constant byte address 0x4 - core index']
  #allocation1 [shape = 'u32[144,128]{1,0:T(1,128)}', space=vmem, size = 0x12000, scoped, tag = 'internal scratch']
  %s0 = inlined_call_operand.hbm [shape: f32[2,4,256], index: 0, kind: input, shape index: {}]
  %s1 = inlined_call_operand.hbm [shape: f32[4,128], index: 1, kind: input, shape index: {}]
  %s2 = inlined_call_operand.vmem [shape: f32[1,128], index: 2, kind: input, shape index: {}]
  %s3 = inlined_call_operand.hbm [shape: f32[2,128], index: 3, kind: output, shape index: {}]
  %s4 = sld [smem:[#allocation0]]
  $region34: #{tpu_custom_call.1} parent=0
    _
  %s6 = ssub.s32 1, %s4
  %s7 = scalar_select 0, %s6, %s4
  $region1: #{tpu_custom_call.1} parent=0
    #allocation2 [shape = 'u8[8192]{0}', space=vmem, size = 0x2000, scoped, tag = 'input window, operand 0, single buffered']
    #allocation3 [shape = 's32[1]{0}', space=sflag, size = 0x4, scoped, tag = 'scoped memory for tpu_custom_call.1']
    #allocation4 [shape = 's32[1]{0}', space=sflag, size = 0x4, scoped, tag = 'scoped memory for tpu_custom_call.1']
    #allocation5 [shape = 'u8[2048]{0}', space=vmem, size = 0x800, scoped, tag = 'input window, operand 1, single buffered']
    #allocation6 [shape = 's32[1]{0}', space=sflag, size = 0x4, scoped, tag = 'scoped memory for tpu_custom_call.1']
    #allocation7 [shape = 'u8[1024]{0}', space=vmem, size = 0x400, scoped, tag = 'output window, operand 0, single buffered']
    %8 = vsyncpa [#allocation3], 0
    %9 = vsyncpa [#allocation6], 0
    %10 = vsyncpa [#allocation4], 0
    // Predicated region
    $region2: #{tpu_custom_call.1} parent=1 // pred_check
      _
    $region3: #{tpu_custom_call.1} parent=1 // pred_check_branch
      %12 = sbr.rel (0) target = $region5
    $region4: #{tpu_custom_call.1} parent=1 // pred_region
      %s14 = ssub.s32 256, 256
      %15 = vsyncadd [#allocation3], %s14
      %s16 = sshll.u32 [#allocation2], 4
      %s17 = int_to_ptr.vmem [resolvable:$true] %s16
      %22 = dma.hbm_to_vmem [thread:$0]  %s0, 256, %s17, [#allocation3], 128, 128, 8
    $region5: #{tpu_custom_call.1} parent=1 // pred_fallthru
      _
    // Predicated region
    $region6: #{tpu_custom_call.1} parent=1 // pred_check
      _
    $region7: #{tpu_custom_call.1} parent=1 // pred_check_branch
      %24 = sbr.rel (0) target = $region9
    $region8: #{tpu_custom_call.1} parent=1 // pred_region
      %s26 = ssub.s32 64, 64
      %27 = vsyncadd [#allocation6], %s26
      %s29 = sshll.u32 [#allocation5], 4
      %s30 = int_to_ptr.vmem [resolvable:$true] %s29
      %32 = dma.hbm_to_vmem [thread:$0]  %s1, 64, %s30, [#allocation6]
    $region9: #{tpu_custom_call.1} parent=1 // pred_fallthru
      _
    // Predicated region
    $region10: #{tpu_custom_call.1} parent=1 // pred_check
      _
    $region11: #{tpu_custom_call.1} parent=1 // pred_check_branch
      %34 = sbr.rel (0) target = $region13
    $region12: #{tpu_custom_call.1} parent=1 // pred_region
      _
    $region13: #{tpu_custom_call.1} parent=1 // pred_fallthru
      _
    // Predicated region
    $region14: #{tpu_custom_call.1} parent=1 // pred_check
      _
    $region15: #{tpu_custom_call.1} parent=1 // pred_check_branch
      %36 = sbr.rel (0) target = $region17
    $region16: #{tpu_custom_call.1} parent=1 // pred_region
      %37 = dma.done [#allocation3], 256
    $region17: #{tpu_custom_call.1} parent=1 // pred_fallthru
      _
    // Predicated region
    $region18: #{tpu_custom_call.1} parent=1 // pred_check
      _
    $region19: #{tpu_custom_call.1} parent=1 // pred_check_branch
      %39 = sbr.rel (0) target = $region21
    $region20: #{tpu_custom_call.1} parent=1 // pred_region
      %40 = dma.done [#allocation6], 64
    $region21: #{tpu_custom_call.1} parent=1 // pred_fallthru
      _
    %p41 = scmp.eq.s32.totalorder 0, 0
    // Predicated region
    $region22: #{tpu_custom_call.1} parent=1 // pred_check
      %p42 = pneg %p41
    $region23: #{tpu_custom_call.1} parent=1 // pred_check_branch
      %44 = sbr.rel (%p42) target = $region25
    $region24: #{tpu_custom_call.1} parent=1 // pred_region
      %v45 = vld [vmem:[%s2] sm:$0x1]
      %v47 = vlaneseq
      %v48 = vshrl.u32 %v47, 7
      %v49 = vsub.s32 0, %v48
      %v50 = vrot.slane %v45, %v49
      %52 = vst [vmem:[#allocation7] sm:$0x3] %v50
    $region25: #{tpu_custom_call.1} parent=1 // pred_fallthru
      _
    %v53 = vld [vmem:[#allocation2] sm:$0xff]
    %v54 = vld [vmem:[#allocation2 + $0x8] sm:$0xff]
    %v57 = vcombine.high %v53, %v53
    %v58 = vcombine.high %v54, %v54
    %vm61 = vcmask 1043456
    %v62 = vsel %vm61, %v53, 0.0
    %v63 = vsel %vm61, %v57, 0.0
    %v64 = vadd.f32 %v62, %v63
    %65 = vadd.xlane.f32.xlu0 %v64
    %v66 = vpop.xlane.xlu0 %65
    %v67 = vsel %vm61, %v54, 0.0
    %v68 = vsel %vm61, %v58, 0.0
    %v69 = vadd.f32 %v67, %v68
    %70 = vadd.xlane.f32.xlu0 %v69
    %v71 = vpop.xlane.xlu0 %70
    %v72 = vld [vmem:[#allocation7] sm:$0x3]
    %v73 = vld [vmem:[#allocation5] sm:$0xf]
    %v76 = vlaneseq
    %v77 = vand.u32 %v76, 127
    %v78 = vlaneseq
    %v79 = vshrl.u32 %v78, 7
    %v80 = vsub.s32 %v77, %v79
    %v81 = vrot.slane %v66, %v80
    %v82 = vlaneseq
    %v83 = vshrl.u32 %v82, 7
    %v84 = vsub.s32 %v77, %v83
    %v85 = vrot.slane %v71, %v84
    %vm86 = vcmask 1041409
    %v87 = vsel %vm86, %v85, %v81
    %vm88 = vcmask 31744
    %v89 = vsel %vm88, %v87, 0
    %v92 = vsel %vm61, %v73, 0
    %94 = vmatprep.subr.mxu0 0.0
    %95 = vmatpush1.msra.mxu0 0.0
    %96 = vmatprep.subr.mxu0 0.0
    %97 = vmatpush1.msra.mxu0 0.0
    %98 = vmatprep.subr.mxu0 0.0
    %99 = vmatpush1.msra.mxu0 0.0
    %100 = vmatprep.subr.mxu0 0.0
    %101 = vmatpush1.msra.mxu0 0.0
    %102 = vmatprep.subr.mxu0 0.0
    %103 = vmatpush1.msra.mxu0 0.0
    %104 = vmatprep.subr.mxu0 0.0
    %105 = vmatpush1.msra.mxu0 0.0
    %106 = vmatprep.subr.mxu0 0.0
    %107 = vmatpush1.msra.mxu0 0.0
    %108 = vmatprep.subr.mxu0 0.0
    %109 = vmatpush1.msra.mxu0 0.0
    %110 = vmatprep.subr.mxu0 0.0
    %111 = vmatpush1.msra.mxu0 0.0
    %112 = vmatprep.subr.mxu0 0.0
    %113 = vmatpush1.msra.mxu0 0.0
    %114 = vmatprep.subr.mxu0 0.0
    %115 = vmatpush1.msra.mxu0 0.0
    %116 = vmatprep.subr.mxu0 0.0
    %117 = vmatpush1.msra.mxu0 0.0
    %118 = vmatprep.subr.mxu0 0.0
    %119 = vmatpush1.msra.mxu0 0.0
    %120 = vmatprep.subr.mxu0 0.0
    %121 = vmatpush1.msra.mxu0 0.0
    %122 = vmatprep.subr.mxu0 0.0
    %123 = vmatpush1.msra.mxu0 0.0
    %124 = vmatprep.subr.mxu0 0.0
    %125 = vmatpush1.msra.mxu0 %v92
    %126 = vmatprep.subr.mxu0 0.0
    %127 = vmatpush2.msra.mxu0 0.0
    %128 = vmatprep.subr.mxu0 0.0
    %129 = vmatpush2.msra.mxu0 0.0
    %130 = vmatprep.subr.mxu0 0.0
    %131 = vmatpush2.msra.mxu0 0.0
    %132 = vmatprep.subr.mxu0 0.0
    %133 = vmatpush2.msra.mxu0 0.0
    %134 = vmatprep.subr.mxu0 0.0
    %135 = vmatpush2.msra.mxu0 0.0
    %136 = vmatprep.subr.mxu0 0.0
    %137 = vmatpush2.msra.mxu0 0.0
    %138 = vmatprep.subr.mxu0 0.0
    %139 = vmatpush2.msra.mxu0 0.0
    %140 = vmatprep.subr.mxu0 0.0
    %141 = vmatpush2.msra.mxu0 0.0
    %142 = vmatprep.subr.mxu0 0.0
    %143 = vmatpush2.msra.mxu0 0.0
    %144 = vmatprep.subr.mxu0 0.0
    %145 = vmatpush2.msra.mxu0 0.0
    %146 = vmatprep.subr.mxu0 0.0
    %147 = vmatpush2.msra.mxu0 0.0
    %148 = vmatprep.subr.mxu0 0.0
    %149 = vmatpush2.msra.mxu0 0.0
    %150 = vmatprep.subr.mxu0 0.0
    %151 = vmatpush2.msra.mxu0 0.0
    %152 = vmatprep.subr.mxu0 0.0
    %153 = vmatpush2.msra.mxu0 0.0
    %154 = vmatprep.subr.mxu0 0.0
    %155 = vmatpush2.msra.mxu0 0.0
    %156 = vmatprep.subr.mxu0 0.0
    %157 = vmatpush2.msra.mxu0 0.0
    %158 = vmatprep.mubr.f32.mxu0 0.0
    %159 = vmatmul.mubr.f32.gmra.mxu0 %v89
    %v160 = vpop.f32.mrf.mxu0
    %v161 = vadd.f32 0.0, %v160
    %v162 = vpop.f32.mrf.mxu0
    %163 = vdwg.mxu0
    %v164 = vadd.f32 %v72, %v161
    %165 = vst [vmem:[#allocation7] sm:$0x3] %v164
    // Predicated region
    $region26: #{tpu_custom_call.1} parent=1 // pred_check
      _
    $region27: #{tpu_custom_call.1} parent=1 // pred_check_branch
      %167 = sbr.rel (0) target = $region29
    $region28: #{tpu_custom_call.1} parent=1 // pred_region
      %s169 = ssub.s32 32, 32
      %170 = vsyncadd [#allocation4], %s169
      %s172 = sshll.u32 [#allocation7], 4
      %s173 = int_to_ptr.vmem [resolvable:$true] %s172
      %175 = dma.vmem_to_hbm [thread:$0]  %s173, 32, %s3, [#allocation4]
    $region29: #{tpu_custom_call.1} parent=1 // pred_fallthru
      _
    // Predicated region
    $region30: #{tpu_custom_call.1} parent=1 // pred_check
      _
    $region31: #{tpu_custom_call.1} parent=1 // pred_check_branch
      %177 = sbr.rel (0) target = $region33
    $region32: #{tpu_custom_call.1} parent=1 // pred_region
      %178 = dma.done [#allocation4], 32
    $region33: #{tpu_custom_call.1} parent=1 // pred_fallthru
      _
    %179 = vsyncpa [#allocation3], 1
    %180 = vsyncpa [#allocation6], 1
    %181 = vsyncpa [#allocation4], 1

</llo_original>
